<compile_context>
chip_gen: v6e
topology: v6e:2x2x1
jax: 0.10.0
libtpu: 0.0.40
codegen_flags: <defaults>
</compile_context>

<pallas_src>
import jax
import jax.numpy as jnp
from jax import lax
from jax.experimental import pallas as pl
from jax.experimental.pallas import tpu as pltpu

LANE = 128  # TPU lane width


# ---------------------------------------------------------------------------
# Noise-matrix construction (mirrors get_single_flip_mat for noise_type='sflip')
# ---------------------------------------------------------------------------
def get_single_flip_mat(noise_level: float, num_classes: int) -> jnp.ndarray:
    """Row-stochastic single-flip matrix: class i keeps (1 - eps) mass and
    flips eps mass to class (i + 1) mod C."""
    eye = jnp.eye(num_classes, dtype=jnp.float32)
    flip = jnp.roll(eye, shift=1, axis=1)
    return (1.0 - noise_level) * eye + noise_level * flip


def _fast_recip(x):
    """EUP approximate reciprocal + one Newton-Raphson step (~f32 accurate)."""
    r = pl.reciprocal(x, approx=True)
    return r * (2.0 - x * r)


# ---------------------------------------------------------------------------
# Pallas kernel: pool -> logits -> softmax -> @ noise_matrix -> log(. + 1e-6)
# One batch tile [TB, T, D]; class dim is padded to Cp (multiple of 128).
# ---------------------------------------------------------------------------
def cmgt_kernel(x_ref, len_ref, w_ref, b_ref, nm_ref, out_ref):
    TB, T, D = x_ref.shape
    lens = len_ref[...]                                   # [TB, 1] int32
    inv_len = _fast_recip(lens.astype(jnp.float32))       # [TB, 1] f32

    # --- base model: length-masked mean pool -------------------------------
    # Accumulate per timestep (static, fully unrolled) -> no [TB, T, D] f32
    # temporary; x stays bf16 in flight and is upcast per slice.
    xb = x_ref[...]                                       # [TB, T, D] (bf16)
    acc = jnp.zeros((TB, D), jnp.float32)
    for t in range(T):
        x_t = xb[:, t, :].astype(jnp.float32)             # [TB, D]
        w_t = jnp.where(t < lens, inv_len, 0.0)           # [TB, 1]
        acc = acc + x_t * w_t
    pooled = acc                                          # [TB, D]

    # --- base model: linear projection (padded class lanes get bias -1e30) --
    logits = jnp.dot(pooled, w_ref[...],
                     preferred_element_type=jnp.float32) + b_ref[...]  # [TB, Cp]

    # --- CMGT head: softmax over classes (padded lanes -> exactly 0 mass) ---
    m = jnp.max(logits, axis=1, keepdims=True)
    e = jnp.exp(logits - m)
    denom = jnp.sum(e, axis=1, keepdims=True)
    clean_dist = e * _fast_recip(denom)                   # [TB, Cp]

    # --- noisy_prob = clean_dist @ noise_matrix;  log(noisy_prob + 1e-6) ----
    noisy_prob = jnp.dot(clean_dist, nm_ref[...],
                         preferred_element_type=jnp.float32)  # [TB, Cp]
    out_ref[...] = jnp.log(noisy_prob + 1e-6)


# ---------------------------------------------------------------------------
# Batch-tile selection: big tiles (HBM roofline), >= 2 grid steps (v7x),
# sublane-aligned block rows (or the full batch when it is tiny).
# ---------------------------------------------------------------------------
def _pick_tb(B: int, tb: int) -> int:
    if B <= 8:
        return B                         # single full block (full-dim exception)
    tb = min(tb, B)
    tb = min(tb, max(8, pl.cdiv(B, 2)))  # keep >= 2 grid steps for megacore
    tb = max(8, (tb // 8) * 8)           # multiple of 8 sublanes
    return tb


# ---------------------------------------------------------------------------
# Wrapper: stream x unpadded/uncopied, pad only the tiny tables, grid over B.
# ---------------------------------------------------------------------------
def cmgt_forward(x, x_length, w, b, noise_matrix, *, tb=256):
    B, T, D = x.shape
    C = noise_matrix.shape[0]
    Cp = pl.cdiv(C, LANE) * LANE

    # Tiny auxiliary inputs (a few KiB) -- cheap to reshape / pad.
    lens = jnp.reshape(x_length, (B, 1)).astype(jnp.int32)
    w_p = jnp.zeros((D, Cp), jnp.float32).at[:, :C].set(w.astype(jnp.float32))
    # Huge negative bias on padded class lanes -> softmax mass is exactly zero.
    b_p = jnp.full((1, Cp), -1e30, jnp.float32).at[:, :C].set(
        jnp.reshape(b, (1, C)).astype(jnp.float32))
    nm_p = jnp.zeros((Cp, Cp), jnp.float32).at[:C, :C].set(
        noise_matrix.astype(jnp.float32))

    tb_eff = _pick_tb(B, tb)
    grid = (pl.cdiv(B, tb_eff),)

    # VMEM budget: double-buffered streamed blocks + resident tables.  Raise
    # the scoped limit only when needed (v5e default 16 MiB; v7x 32 of 64 MiB).
    x_itemsize = jnp.dtype(x.dtype).itemsize
    blk_bytes = tb_eff * T * D * x_itemsize + tb_eff * 4 + tb_eff * Cp * 4
    table_bytes = (D * Cp + Cp + Cp * Cp) * 4
    need = 2 * blk_bytes + 2 * table_bytes + (1 << 20)
    cp_kwargs = {}
    if need > 12 * 1024 * 1024:
        cp_kwargs["vmem_limit_bytes"] = int(min(60 * 1024 * 1024, need * 1.5))

    cost = pl.CostEstimate(
        flops=2 * B * (T * D + D * Cp + Cp * Cp),
        transcendentals=2 * B * Cp,
        bytes_accessed=(B * T * D * x_itemsize + B * 4 + B * Cp * 4
                        + table_bytes),
    )

    out_padded = pl.pallas_call(
        cmgt_kernel,
        out_shape=jax.ShapeDtypeStruct((B, Cp), jnp.float32),
        grid=grid,
        in_specs=[
            pl.BlockSpec((tb_eff, T, D), lambda i: (i, 0, 0)),  # x: streamed, unpadded
            pl.BlockSpec((tb_eff, 1), lambda i: (i, 0)),        # lengths (int32)
            pl.BlockSpec((D, Cp), lambda i: (0, 0)),            # w: resident
            pl.BlockSpec((1, Cp), lambda i: (0, 0)),            # b: resident
            pl.BlockSpec((Cp, Cp), lambda i: (0, 0)),           # noise matrix
        ],
        out_specs=pl.BlockSpec((tb_eff, Cp), lambda i: (i, 0)),
        compiler_params=pltpu.CompilerParams(
            dimension_semantics=("parallel",), **cp_kwargs),
        cost_estimate=cost,
    )(x, lens, w_p, b_p, nm_p)

    return {"log_noisy_logits": out_padded[:, :C]}


# ---------------------------------------------------------------------------
# Pure-JAX reference for correctness checking
# ---------------------------------------------------------------------------
def cmgt_reference(x, x_length, w, b, noise_matrix):
    x = x.astype(jnp.float32)
    B, T, D = x.shape
    lens = jnp.reshape(x_length, (B, 1)).astype(jnp.float32)
    t_idx = jnp.arange(T, dtype=jnp.float32)[None, :]
    mask = (t_idx < lens).astype(jnp.float32)
    pooled = jnp.sum(x * mask[:, :, None], axis=1) / lens
    logits = pooled @ w.astype(jnp.float32) + jnp.reshape(b, (1, -1)).astype(jnp.float32)
    dist = jax.nn.softmax(logits, axis=1)
    return jnp.log(dist @ noise_matrix.astype(jnp.float32) + 1e-6)


if __name__ == "__main__":
    # Small shapes consistent with the forward: B=16, T=8, D=32, C=4.
    B, T, D, C = 16, 8, 32, 4
    noise_level = 0.2

    key = jax.random.PRNGKey(0)
    kx, kw, kl = jax.random.split(key, 3)

    # x is stored/streamed in bf16 (halves HBM bytes of the only large input).
    x = jax.random.normal(kx, (B, T, D), dtype=jnp.float32).astype(jnp.bfloat16)
    x_length = jax.random.randint(kl, (B, 1), minval=1, maxval=T + 1)  # int32

    # Deterministic synthetic base-model parameters.
    # TODO(synk): the real CMGT wraps an arbitrary base_model; this masked
    # mean-pool + linear head is a stand-in with the same I/O contract.
    w = jax.random.normal(kw, (D, C), dtype=jnp.float32) * 0.1
    b = jnp.zeros((1, C), dtype=jnp.float32)

    # Fixed (non-trainable) noise matrix, noise_type='sflip'.
    noise_matrix = get_single_flip_mat(noise_level, C)

    out = cmgt_forward(x, x_length, w, b, noise_matrix)
    log_noisy_logits = jax.block_until_ready(out["log_noisy_logits"])

    ref = cmgt_reference(x, x_length, w, b, noise_matrix)
    assert log_noisy_logits.shape == (B, C)
    assert bool(jnp.allclose(log_noisy_logits, ref, atol=1e-4, rtol=1e-4)), (
        float(jnp.max(jnp.abs(log_noisy_logits - ref))))

    print("KERNEL_OK")
</pallas_src>

<mosaic_0001>
module attributes {stable_mosaic.version = 11 : i64} {
  func.func @cmgt_kernel(%arg0: i32, %arg1: memref<8x8x32xbf16, #tpu.memory_space<vmem>>, %arg2: memref<8x1xi32, #tpu.memory_space<vmem>>, %arg3: memref<32x128xf32, #tpu.memory_space<vmem>>, %arg4: memref<1x128xf32, #tpu.memory_space<vmem>>, %arg5: memref<128x128xf32, #tpu.memory_space<vmem>>, %arg6: memref<8x128xf32, #tpu.memory_space<vmem>>) attributes {dimension_semantics = [#tpu.dimension_semantics<parallel>], iteration_bounds = array<i64: 2>, scalar_prefetch = 0 : i64, scratch_operands = 0 : i64, tpu.core_type = #tpu.core_type<tc>, window_params = [{transform_indices = @transform_0, window_bounds = array<i64: 8, 8, 32>}, {transform_indices = @transform_1, window_bounds = array<i64: 8, 1>}, {pipeline_mode = #tpu.pipeline_mode<synchronous>, transform_indices = @transform_2, window_bounds = array<i64: 32, 128>}, {pipeline_mode = #tpu.pipeline_mode<synchronous>, transform_indices = @transform_3, window_bounds = array<i64: 1, 128>}, {pipeline_mode = #tpu.pipeline_mode<synchronous>, transform_indices = @transform_4, window_bounds = array<i64: 128, 128>}, {transform_indices = @transform_5, window_bounds = array<i64: 8, 128>}]} {
    %c0 = arith.constant 0 : index
    %c0_0 = arith.constant 0 : index
    %0 = vector.load %arg2[%c0, %c0_0] : memref<8x1xi32, #tpu.memory_space<vmem>>, vector<8x1xi32>
    %1 = arith.sitofp %0 : vector<8x1xi32> to vector<8x1xf32>
    %2 = tpu.reciprocal %1 {approx = true} : vector<8x1xf32> -> vector<8x1xf32>
    %3 = arith.mulf %1, %2 : vector<8x1xf32>
    %cst = arith.constant 2.000000e+00 : f32
    %4 = vector.broadcast %cst : f32 to vector<8x1xf32>
    %5 = arith.subf %4, %3 : vector<8x1xf32>
    %6 = arith.mulf %2, %5 : vector<8x1xf32>
    %c0_1 = arith.constant 0 : index
    %c0_2 = arith.constant 0 : index
    %c0_3 = arith.constant 0 : index
    %7 = vector.load %arg1[%c0_1, %c0_2, %c0_3] : memref<8x8x32xbf16, #tpu.memory_space<vmem>>, vector<8x8x32xbf16>
    %cst_4 = arith.constant 0.000000e+00 : f32
    %8 = vector.broadcast %cst_4 : f32 to vector<8x32xf32>
    %9 = vector.extract_strided_slice %7 {offsets = [0, 0, 0], sizes = [8, 1, 32], strides = [1, 1, 1]} : vector<8x8x32xbf16> to vector<8x1x32xbf16>
    %10 = vector.shape_cast %9 : vector<8x1x32xbf16> to vector<8x32xbf16>
    %11 = arith.extf %10 : vector<8x32xbf16> to vector<8x32xf32>
    %c0_i32 = arith.constant 0 : i32
    %12 = vector.broadcast %c0_i32 : i32 to vector<8x1xi32>
    %13 = arith.cmpi sgt, %0, %12 : vector<8x1xi32>
    %cst_5 = arith.constant 0.000000e+00 : f32
    %14 = vector.broadcast %cst_5 : f32 to vector<8x1xf32>
    %15 = arith.select %13, %6, %14 : vector<8x1xi1>, vector<8x1xf32>
    %16 = vector.broadcast %15 : vector<8x1xf32> to vector<8x32xf32>
    %17 = arith.mulf %11, %16 : vector<8x32xf32>
    %18 = arith.addf %8, %17 : vector<8x32xf32>
    %19 = vector.extract_strided_slice %7 {offsets = [0, 1, 0], sizes = [8, 1, 32], strides = [1, 1, 1]} : vector<8x8x32xbf16> to vector<8x1x32xbf16>
    %20 = vector.shape_cast %19 : vector<8x1x32xbf16> to vector<8x32xbf16>
    %21 = arith.extf %20 : vector<8x32xbf16> to vector<8x32xf32>
    %c1_i32 = arith.constant 1 : i32
    %22 = vector.broadcast %c1_i32 : i32 to vector<8x1xi32>
    %23 = arith.cmpi sgt, %0, %22 : vector<8x1xi32>
    %cst_6 = arith.constant 0.000000e+00 : f32
    %24 = vector.broadcast %cst_6 : f32 to vector<8x1xf32>
    %25 = arith.select %23, %6, %24 : vector<8x1xi1>, vector<8x1xf32>
    %26 = vector.broadcast %25 : vector<8x1xf32> to vector<8x32xf32>
    %27 = arith.mulf %21, %26 : vector<8x32xf32>
    %28 = arith.addf %18, %27 : vector<8x32xf32>
    %29 = vector.extract_strided_slice %7 {offsets = [0, 2, 0], sizes = [8, 1, 32], strides = [1, 1, 1]} : vector<8x8x32xbf16> to vector<8x1x32xbf16>
    %30 = vector.shape_cast %29 : vector<8x1x32xbf16> to vector<8x32xbf16>
    %31 = arith.extf %30 : vector<8x32xbf16> to vector<8x32xf32>
    %c2_i32 = arith.constant 2 : i32
    %32 = vector.broadcast %c2_i32 : i32 to vector<8x1xi32>
    %33 = arith.cmpi sgt, %0, %32 : vector<8x1xi32>
    %cst_7 = arith.constant 0.000000e+00 : f32
    %34 = vector.broadcast %cst_7 : f32 to vector<8x1xf32>
    %35 = arith.select %33, %6, %34 : vector<8x1xi1>, vector<8x1xf32>
    %36 = vector.broadcast %35 : vector<8x1xf32> to vector<8x32xf32>
    %37 = arith.mulf %31, %36 : vector<8x32xf32>
    %38 = arith.addf %28, %37 : vector<8x32xf32>
    %39 = vector.extract_strided_slice %7 {offsets = [0, 3, 0], sizes = [8, 1, 32], strides = [1, 1, 1]} : vector<8x8x32xbf16> to vector<8x1x32xbf16>
    %40 = vector.shape_cast %39 : vector<8x1x32xbf16> to vector<8x32xbf16>
    %41 = arith.extf %40 : vector<8x32xbf16> to vector<8x32xf32>
    %c3_i32 = arith.constant 3 : i32
    %42 = vector.broadcast %c3_i32 : i32 to vector<8x1xi32>
    %43 = arith.cmpi sgt, %0, %42 : vector<8x1xi32>
    %cst_8 = arith.constant 0.000000e+00 : f32
    %44 = vector.broadcast %cst_8 : f32 to vector<8x1xf32>
    %45 = arith.select %43, %6, %44 : vector<8x1xi1>, vector<8x1xf32>
    %46 = vector.broadcast %45 : vector<8x1xf32> to vector<8x32xf32>
    %47 = arith.mulf %41, %46 : vector<8x32xf32>
    %48 = arith.addf %38, %47 : vector<8x32xf32>
    %49 = vector.extract_strided_slice %7 {offsets = [0, 4, 0], sizes = [8, 1, 32], strides = [1, 1, 1]} : vector<8x8x32xbf16> to vector<8x1x32xbf16>
    %50 = vector.shape_cast %49 : vector<8x1x32xbf16> to vector<8x32xbf16>
    %51 = arith.extf %50 : vector<8x32xbf16> to vector<8x32xf32>
    %c4_i32 = arith.constant 4 : i32
    %52 = vector.broadcast %c4_i32 : i32 to vector<8x1xi32>
    %53 = arith.cmpi sgt, %0, %52 : vector<8x1xi32>
    %cst_9 = arith.constant 0.000000e+00 : f32
    %54 = vector.broadcast %cst_9 : f32 to vector<8x1xf32>
    %55 = arith.select %53, %6, %54 : vector<8x1xi1>, vector<8x1xf32>
    %56 = vector.broadcast %55 : vector<8x1xf32> to vector<8x32xf32>
    %57 = arith.mulf %51, %56 : vector<8x32xf32>
    %58 = arith.addf %48, %57 : vector<8x32xf32>
    %59 = vector.extract_strided_slice %7 {offsets = [0, 5, 0], sizes = [8, 1, 32], strides = [1, 1, 1]} : vector<8x8x32xbf16> to vector<8x1x32xbf16>
    %60 = vector.shape_cast %59 : vector<8x1x32xbf16> to vector<8x32xbf16>
    %61 = arith.extf %60 : vector<8x32xbf16> to vector<8x32xf32>
    %c5_i32 = arith.constant 5 : i32
    %62 = vector.broadcast %c5_i32 : i32 to vector<8x1xi32>
    %63 = arith.cmpi sgt, %0, %62 : vector<8x1xi32>
    %cst_10 = arith.constant 0.000000e+00 : f32
    %64 = vector.broadcast %cst_10 : f32 to vector<8x1xf32>
    %65 = arith.select %63, %6, %64 : vector<8x1xi1>, vector<8x1xf32>
    %66 = vector.broadcast %65 : vector<8x1xf32> to vector<8x32xf32>
    %67 = arith.mulf %61, %66 : vector<8x32xf32>
    %68 = arith.addf %58, %67 : vector<8x32xf32>
    %69 = vector.extract_strided_slice %7 {offsets = [0, 6, 0], sizes = [8, 1, 32], strides = [1, 1, 1]} : vector<8x8x32xbf16> to vector<8x1x32xbf16>
    %70 = vector.shape_cast %69 : vector<8x1x32xbf16> to vector<8x32xbf16>
    %71 = arith.extf %70 : vector<8x32xbf16> to vector<8x32xf32>
    %c6_i32 = arith.constant 6 : i32
    %72 = vector.broadcast %c6_i32 : i32 to vector<8x1xi32>
    %73 = arith.cmpi sgt, %0, %72 : vector<8x1xi32>
    %cst_11 = arith.constant 0.000000e+00 : f32
    %74 = vector.broadcast %cst_11 : f32 to vector<8x1xf32>
    %75 = arith.select %73, %6, %74 : vector<8x1xi1>, vector<8x1xf32>
    %76 = vector.broadcast %75 : vector<8x1xf32> to vector<8x32xf32>
    %77 = arith.mulf %71, %76 : vector<8x32xf32>
    %78 = arith.addf %68, %77 : vector<8x32xf32>
    %79 = vector.extract_strided_slice %7 {offsets = [0, 7, 0], sizes = [8, 1, 32], strides = [1, 1, 1]} : vector<8x8x32xbf16> to vector<8x1x32xbf16>
    %80 = vector.shape_cast %79 : vector<8x1x32xbf16> to vector<8x32xbf16>
    %81 = arith.extf %80 : vector<8x32xbf16> to vector<8x32xf32>
    %c7_i32 = arith.constant 7 : i32
    %82 = vector.broadcast %c7_i32 : i32 to vector<8x1xi32>
    %83 = arith.cmpi sgt, %0, %82 : vector<8x1xi32>
    %cst_12 = arith.constant 0.000000e+00 : f32
    %84 = vector.broadcast %cst_12 : f32 to vector<8x1xf32>
    %85 = arith.select %83, %6, %84 : vector<8x1xi1>, vector<8x1xf32>
    %86 = vector.broadcast %85 : vector<8x1xf32> to vector<8x32xf32>
    %87 = arith.mulf %81, %86 : vector<8x32xf32>
    %88 = arith.addf %78, %87 : vector<8x32xf32>
    %c0_13 = arith.constant 0 : index
    %c0_14 = arith.constant 0 : index
    %89 = vector.load %arg3[%c0_13, %c0_14] : memref<32x128xf32, #tpu.memory_space<vmem>>, vector<32x128xf32>
    %cst_15 = arith.constant dense<0.000000e+00> : vector<8x128xf32>
    %90 = tpu.matmul %88, %89, %cst_15 {dimension_numbers = #tpu.dot_dimension_numbers<[1], [0], [0], [1], [0, 0, 1, 1], [], []>} : vector<8x32xf32>, vector<32x128xf32>, vector<8x128xf32> -> vector<8x128xf32>
    %c0_16 = arith.constant 0 : index
    %c0_17 = arith.constant 0 : index
    %91 = vector.load %arg4[%c0_16, %c0_17] : memref<1x128xf32, #tpu.memory_space<vmem>>, vector<1x128xf32>
    %92 = vector.broadcast %91 : vector<1x128xf32> to vector<8x128xf32>
    %93 = arith.addf %90, %92 : vector<8x128xf32>
    %cst_18 = arith.constant dense<0xFF800000> : vector<8xf32>
    %94 = vector.multi_reduction <maximumf>, %93, %cst_18 [1] : vector<8x128xf32> to vector<8xf32>
    %95 = vector.shape_cast %94 : vector<8xf32> to vector<8x1xf32>
    %96 = vector.broadcast %95 : vector<8x1xf32> to vector<8x128xf32>
    %97 = arith.subf %93, %96 : vector<8x128xf32>
    %98 = math.exp %97 : vector<8x128xf32>
    %cst_19 = arith.constant dense<0.000000e+00> : vector<8xf32>
    %99 = vector.multi_reduction <add>, %98, %cst_19 [1] : vector<8x128xf32> to vector<8xf32>
    %100 = vector.shape_cast %99 : vector<8xf32> to vector<8x1xf32>
    %101 = tpu.reciprocal %100 {approx = true} : vector<8x1xf32> -> vector<8x1xf32>
    %102 = arith.mulf %100, %101 : vector<8x1xf32>
    %cst_20 = arith.constant 2.000000e+00 : f32
    %103 = vector.broadcast %cst_20 : f32 to vector<8x1xf32>
    %104 = arith.subf %103, %102 : vector<8x1xf32>
    %105 = arith.mulf %101, %104 : vector<8x1xf32>
    %106 = vector.broadcast %105 : vector<8x1xf32> to vector<8x128xf32>
    %107 = arith.mulf %98, %106 : vector<8x128xf32>
    %c0_21 = arith.constant 0 : index
    %c0_22 = arith.constant 0 : index
    %108 = vector.load %arg5[%c0_21, %c0_22] : memref<128x128xf32, #tpu.memory_space<vmem>>, vector<128x128xf32>
    %cst_23 = arith.constant dense<0.000000e+00> : vector<8x128xf32>
    %109 = tpu.matmul %107, %108, %cst_23 {dimension_numbers = #tpu.dot_dimension_numbers<[1], [0], [0], [1], [0, 0, 1, 1], [], []>} : vector<8x128xf32>, vector<128x128xf32>, vector<8x128xf32> -> vector<8x128xf32>
    %cst_24 = arith.constant 9.99999997E-7 : f32
    %110 = vector.broadcast %cst_24 : f32 to vector<8x128xf32>
    %111 = arith.addf %109, %110 : vector<8x128xf32>
    %112 = math.log %111 : vector<8x128xf32>
    %c0_25 = arith.constant 0 : index
    %c0_26 = arith.constant 0 : index
    %113 = vector.load %arg6[%c0_25, %c0_26] : memref<8x128xf32, #tpu.memory_space<vmem>>, vector<8x128xf32>
    tpu.vector_store %arg6[%c0_25, %c0_26], %112 {strides = array<i32>} : memref<8x128xf32, #tpu.memory_space<vmem>>, vector<8x128xf32>,
    return
  }
  func.func @transform_0(%arg0: i32) -> (i32, i32, i32) {
    %c0_i32 = arith.constant 0 : i32
    %c0_i32_0 = arith.constant 0 : i32
    %c0_i32_1 = arith.constant 0 : i32
    return %arg0, %c0_i32, %c0_i32_0 : i32, i32, i32
  }
  func.func @transform_1(%arg0: i32) -> (i32, i32) {
    %c0_i32 = arith.constant 0 : i32
    %c0_i32_0 = arith.constant 0 : i32
    return %arg0, %c0_i32 : i32, i32
  }
  func.func @transform_2(%arg0: i32) -> (i32, i32) {
    %c0_i32 = arith.constant 0 : i32
    %c0_i32_0 = arith.constant 0 : i32
    %c0_i32_1 = arith.constant 0 : i32
    return %c0_i32, %c0_i32_0 : i32, i32
  }
  func.func @transform_3(%arg0: i32) -> (i32, i32) {
    %c0_i32 = arith.constant 0 : i32
    %c0_i32_0 = arith.constant 0 : i32
    %c0_i32_1 = arith.constant 0 : i32
    return %c0_i32, %c0_i32_0 : i32, i32
  }
  func.func @transform_4(%arg0: i32) -> (i32, i32) {
    %c0_i32 = arith.constant 0 : i32
    %c0_i32_0 = arith.constant 0 : i32
    %c0_i32_1 = arith.constant 0 : i32
    return %c0_i32, %c0_i32_0 : i32, i32
  }
  func.func @transform_5(%arg0: i32) -> (i32, i32) {
    %c0_i32 = arith.constant 0 : i32
    %c0_i32_0 = arith.constant 0 : i32
    return %arg0, %c0_i32 : i32, i32
  }
}

</mosaic_0001>

<llo_original>
// kernel: tpu_custom_call.1
$region0: #{tpu_custom_call.1}
  #allocation0 [shape = 'u32[]', space=smem, size = 0x4, offset = 0x4, fixed_abs, tag = 'smem constant byte address 0x4 - core index']
  #allocation1 [shape = 'u32[144,128]{1,0:T(1,128)}', space=vmem, size = 0x12000, scoped, tag = 'internal scratch']
  %s0 = inlined_call_operand.hbm [shape: bf16[16,8,32], index: 0, kind: input, shape index: {}]
  %s1 = inlined_call_operand.vmem [shape: s32[16,1], index: 1, kind: input, shape index: {}]
  %s2 = inlined_call_operand.hbm [shape: f32[32,128], index: 2, kind: input, shape index: {}]
  %s3 = inlined_call_operand.vmem [shape: f32[1,128], index: 3, kind: input, shape index: {}]
  %s4 = inlined_call_operand.hbm [shape: f32[128,128], index: 4, kind: input, shape index: {}]
  %s5 = inlined_call_operand.hbm [shape: f32[16,128], index: 5, kind: output, shape index: {}]
  %s6 = sld [smem:[#allocation0]]
  $region65: #{tpu_custom_call.1} parent=0
    _
  %s8 = ssub.s32 1, %s6
  %s9 = scalar_select 0, %s8, %s6
  $region1: #{tpu_custom_call.1} parent=0
    #allocation2 [shape = 'u8[32768]{0}', space=vmem, size = 0x8000, scoped, tag = 'input window, operand 0']
    #allocation3 [shape = 's32[2]{0}', space=sflag, size = 0x8, scoped, tag = 'scoped memory for tpu_custom_call.1']
    #allocation4 [shape = 's32[2]{0}', space=sflag, size = 0x8, scoped, tag = 'scoped memory for tpu_custom_call.1']
    #allocation5 [shape = 'u8[16384]{0}', space=vmem, size = 0x4000, scoped, tag = 'input window, operand 2, single buffered']
    #allocation6 [shape = 's32[1]{0}', space=sflag, size = 0x4, scoped, tag = 'scoped memory for tpu_custom_call.1']
    #allocation7 [shape = 'u8[65536]{0}', space=vmem, size = 0x10000, scoped, tag = 'input window, operand 4, single buffered']
    #allocation8 [shape = 'u8[8192]{0}', space=vmem, size = 0x2000, scoped, tag = 'output window, operand 0']
    %10 = vsyncpa [#allocation3], 0
    %s11 = scalar_lea.sflag [#allocation3], 1
    %12 = vsyncpa %s11, 0
    %13 = vsyncpa [#allocation6], 0
    %14 = vsyncpa [#allocation4], 0
    %s15 = scalar_lea.sflag [#allocation4], 1
    %16 = vsyncpa %s15, 0
    loop: start=0, step=1, limit=4
    $region2: #{tpu_custom_call.1} parent=1 // loop_pre_header
      _
    $region3: #{tpu_custom_call.1} parent=1 // loop_header
      %s18 = sphi 0, %s22
      %p19 = scmp.ge.s32.totalorder %s18, 4
      %s28 = sphi 0, %s30
      %s31 = sphi 0, %s28
      %s32 = sphi 0, %s31
      %s48 = sphi 0, %s32
      %s54 = sphi 0, %s56
      %s57 = sphi 0, %s54
      %s58 = sphi 0, %s57
      %s74 = sphi 0, %s58
      %s78 = sphi 0, %s78
      %s80 = sphi 0, %s78
      %s81 = sphi 0, %s80
      %s95 = sphi 0, %s81
      %s99 = sphi 0, %s99
      %s101 = sphi 0, %s99
      %s102 = sphi 0, %s101
      %s116 = sphi 0, %s102
      %s120 = sphi 0, %s120
      %s122 = sphi 0, %s120
      %s123 = sphi 0, %s122
      %s137 = sphi 0, %s123
      %s143 = sphi 0, %s145
      %s146 = sphi 0, %s143
      %s147 = sphi 0, %s146
      %s163 = sphi 0, %s147
    $region4: #{tpu_custom_call.1} parent=1 // loop_header_branch
      %21 = sbr.rel (%p19) target = $region8
    $region5: #{tpu_custom_call.1} parent=1 // loop_body
      %s23 = ssub.s32 %s18, 1
      %s24 = ssub.s32 %s18, 2
      %s25 = sadd.s32 %s18, 1
      %s26 = ssub.s32 %s18, %s25
      %p27 = scmp.eq.s32.totalorder %s26, 0
      %s29 = sadd.s32 %s28, 1
      %s30 = scalar_select %p27, %s28, %s29
      %p33 = pneg %p27
      %p34 = scmp.eq.s32.totalorder %s18, 1
      %p35 = por %p33, %p34
      %p36 = scmp.ne.s32.totalorder %s28, %s31
      %p37 = scmp.eq.s32.totalorder %s18, 0
      %p38 = por %p36, %p37
      %p39 = scmp.ne.s32.totalorder %s28, %s31
      %p40 = scmp.eq.s32.totalorder %s23, 1
      %p41 = por %p39, %p40
      %p42 = scmp.ne.s32.totalorder %s31, %s32
      %p43 = scmp.eq.s32.totalorder %s23, 0
      %p44 = por %p42, %p43
      %p45 = scmp.ne.s32.totalorder %s31, %s32
      %p46 = scmp.eq.s32.totalorder %s24, 1
      %p47 = por %p45, %p46
      %p49 = scmp.ne.s32.totalorder %s32, %s48
      %p50 = scmp.eq.s32.totalorder %s24, 0
      %p51 = por %p49, %p50
      %s52 = ssub.s32 %s18, %s25
      %p53 = scmp.eq.s32.totalorder %s52, 0
      %s55 = sadd.s32 %s54, 1
      %s56 = scalar_select %p53, %s54, %s55
      %p59 = pneg %p53
      %p60 = scmp.eq.s32.totalorder %s18, 1
      %p61 = por %p59, %p60
      %p62 = scmp.ne.s32.totalorder %s54, %s57
      %p63 = scmp.eq.s32.totalorder %s18, 0
      %p64 = por %p62, %p63
      %p65 = scmp.ne.s32.totalorder %s54, %s57
      %p66 = scmp.eq.s32.totalorder %s23, 1
      %p67 = por %p65, %p66
      %p68 = scmp.ne.s32.totalorder %s57, %s58
      %p69 = scmp.eq.s32.totalorder %s23, 0
      %p70 = por %p68, %p69
      %p71 = scmp.ne.s32.totalorder %s57, %s58
      %p72 = scmp.eq.s32.totalorder %s24, 1
      %p73 = por %p71, %p72
      %p75 = scmp.ne.s32.totalorder %s58, %s74
      %p76 = scmp.eq.s32.totalorder %s24, 0
      %p77 = por %p75, %p76
      %s79 = sadd.s32 %s78, 1
      %p82 = scmp.eq.s32.totalorder %s18, 1
      %p83 = scmp.ne.s32.totalorder %s78, %s80
      %p84 = scmp.eq.s32.totalorder %s18, 0
      %p85 = por %p83, %p84
      %p86 = scmp.ne.s32.totalorder %s78, %s80
      %p87 = scmp.eq.s32.totalorder %s23, 1
      %p88 = por %p86, %p87
      %p89 = scmp.ne.s32.totalorder %s80, %s81
      %p90 = scmp.eq.s32.totalorder %s23, 0
      %p91 = por %p89, %p90
      %p92 = scmp.ne.s32.totalorder %s80, %s81
      %p93 = scmp.eq.s32.totalorder %s24, 1
      %p94 = por %p92, %p93
      %p96 = scmp.ne.s32.totalorder %s81, %s95
      %p97 = scmp.eq.s32.totalorder %s24, 0
      %p98 = por %p96, %p97
      %s100 = sadd.s32 %s99, 1
      %p103 = scmp.eq.s32.totalorder %s18, 1
      %p104 = scmp.ne.s32.totalorder %s99, %s101
      %p105 = scmp.eq.s32.totalorder %s18, 0
      %p106 = por %p104, %p105
      %p107 = scmp.ne.s32.totalorder %s99, %s101
      %p108 = scmp.eq.s32.totalorder %s23, 1
      %p109 = por %p107, %p108
      %p110 = scmp.ne.s32.totalorder %s101, %s102
      %p111 = scmp.eq.s32.totalorder %s23, 0
      %p112 = por %p110, %p111
      %p113 = scmp.ne.s32.totalorder %s101, %s102
      %p114 = scmp.eq.s32.totalorder %s24, 1
      %p115 = por %p113, %p114
      %p117 = scmp.ne.s32.totalorder %s102, %s116
      %p118 = scmp.eq.s32.totalorder %s24, 0
      %p119 = por %p117, %p118
      %s121 = sadd.s32 %s120, 1
      %p124 = scmp.eq.s32.totalorder %s18, 1
      %p125 = scmp.ne.s32.totalorder %s120, %s122
      %p126 = scmp.eq.s32.totalorder %s18, 0
      %p127 = por %p125, %p126
      %p128 = scmp.ne.s32.totalorder %s120, %s122
      %p129 = scmp.eq.s32.totalorder %s23, 1
      %p130 = por %p128, %p129
      %p131 = scmp.ne.s32.totalorder %s122, %s123
      %p132 = scmp.eq.s32.totalorder %s23, 0
      %p133 = por %p131, %p132
      %p134 = scmp.ne.s32.totalorder %s122, %s123
      %p135 = scmp.eq.s32.totalorder %s24, 1
      %p136 = por %p134, %p135
      %p138 = scmp.ne.s32.totalorder %s123, %s137
      %p139 = scmp.eq.s32.totalorder %s24, 0
      %p140 = por %p138, %p139
      %s141 = ssub.s32 %s18, %s25
      %p142 = scmp.eq.s32.totalorder %s141, 0
      %s144 = sadd.s32 %s143, 1
      %s145 = scalar_select %p142, %s143, %s144
      %p148 = pneg %p142
      %p149 = scmp.eq.s32.totalorder %s18, 1
      %p150 = por %p148, %p149
      %p151 = scmp.ne.s32.totalorder %s143, %s146
      %p152 = scmp.eq.s32.totalorder %s18, 0
      %p153 = por %p151, %p152
      %p154 = scmp.ne.s32.totalorder %s143, %s146
      %p155 = scmp.eq.s32.totalorder %s23, 1
      %p156 = por %p154, %p155
      %p157 = scmp.ne.s32.totalorder %s146, %s147
      %p158 = scmp.eq.s32.totalorder %s23, 0
      %p159 = por %p157, %p158
      %p160 = scmp.ne.s32.totalorder %s146, %s147
      %p161 = scmp.eq.s32.totalorder %s24, 1
      %p162 = por %p160, %p161
      %p164 = scmp.ne.s32.totalorder %s147, %s163
      %p165 = scmp.eq.s32.totalorder %s24, 0
      %p166 = por %p164, %p165
      %p167 = scmp.le.s32.totalorder 1, %s18
      %p168 = scmp.lt.s32.totalorder %s18, 3
      %p169 = pnand %p167, %p168
      %p170 = pneg %p169
      // Predicated region
      $region9: #{tpu_custom_call.1} parent=5 // pred_check
        _
      $region10: #{tpu_custom_call.1} parent=5 // pred_check_branch
        %172 = sbr.rel (%p169) target = $region12
      $region11: #{tpu_custom_call.1} parent=5 // pred_region
        %s173 = ssub.s32 %s18, 1
        // Predicated region
        $region13: #{tpu_custom_call.1} parent=11 // pred_check
          %p174 = pneg %p91
        $region14: #{tpu_custom_call.1} parent=11 // pred_check_branch
          %176 = sbr.rel (%p174) target = $region16
        $region15: #{tpu_custom_call.1} parent=11 // pred_region
          %s178 = ssub.s32 512, 512
          %179 = vsyncadd [#allocation6], %s178
          %s180 = sshll.u32 [#allocation5], 4
          %s181 = int_to_ptr.vmem [resolvable:$true] %s180
          %186 = dma.hbm_to_vmem [thread:$0]  %s2, 512, %s181, [#allocation6], 128, 128, 8
        $region16: #{tpu_custom_call.1} parent=11 // pred_fallthru
          _
        // Predicated region
        $region17: #{tpu_custom_call.1} parent=11 // pred_check
          %p187 = pneg %p112
        $region18: #{tpu_custom_call.1} parent=11 // pred_check_branch
          %189 = sbr.rel (%p187) target = $region20
        $region19: #{tpu_custom_call.1} parent=11 // pred_region
          _
        $region20: #{tpu_custom_call.1} parent=11 // pred_fallthru
          _
        // Predicated region
        $region21: #{tpu_custom_call.1} parent=11 // pred_check
          %p190 = pneg %p133
        $region22: #{tpu_custom_call.1} parent=11 // pred_check_branch
          %192 = sbr.rel (%p190) target = $region24
        $region23: #{tpu_custom_call.1} parent=11 // pred_region
          %s194 = ssub.s32 2048, 2048
          %195 = vsyncadd [#allocation6], %s194
          %s196 = sshll.u32 [#allocation7], 4
          %s197 = int_to_ptr.vmem [resolvable:$true] %s196
          %202 = dma.hbm_to_vmem [thread:$0]  %s4, 2048, %s197, [#allocation6], 128, 128, 8
        $region24: #{tpu_custom_call.1} parent=11 // pred_fallthru
          _
      $region12: #{tpu_custom_call.1} parent=5 // pred_fallthru
        _
      %p203 = scmp.lt.s32.totalorder %s18, 2
      // Predicated region
      $region25: #{tpu_custom_call.1} parent=5 // pred_check
        %p204 = pneg %p203
      $region26: #{tpu_custom_call.1} parent=5 // pred_check_branch
        %206 = sbr.rel (%p204) target = $region28
      $region27: #{tpu_custom_call.1} parent=5 // pred_region
        // Predicated region
        $region29: #{tpu_custom_call.1} parent=27 // pred_check
          %p207 = pneg %p38
        $region30: #{tpu_custom_call.1} parent=27 // pred_check_branch
          %209 = sbr.rel (%p207) target = $region32
        $region31: #{tpu_custom_call.1} parent=27 // pred_region
          %s210 = sand.u32 %s28, 1
          %s211 = scalar_lea.sflag [#allocation3], %s210
          %s212 = sand.u32 %s28, 1
          %s213 = smul.addr %s212, 32
          %s214 = scalar_lea.vmem [#allocation2], %s213
          %s215 = smul.u32 8, %s18
          %s217 = ssub.s32 512, 512
          %218 = vsyncadd %s211, %s217
          %s219 = smul.addr %s215, 64
          %s220 = scalar_lea.hbm %s0, %s219
          %s221 = sshll.u32 %s214, 4
          %s222 = int_to_ptr.vmem [resolvable:$true] %s221
          %227 = dma.hbm_to_vmem [thread:$0]  %s220, 512, %s222, %s211, 64, 64, 4
        $region32: #{tpu_custom_call.1} parent=27 // pred_fallthru
          _
        // Predicated region
        $region33: #{tpu_custom_call.1} parent=27 // pred_check
          %p228 = pneg %p64
        $region34: #{tpu_custom_call.1} parent=27 // pred_check_branch
          %230 = sbr.rel (%p228) target = $region36
        $region35: #{tpu_custom_call.1} parent=27 // pred_region
          %p231 = scmp.lt.s32.totalorder %s18, 1
          %s232 = scalar_select %p231, %s18, 1
          %s233 = smul.addr %s232, 8
          %s234 = scalar_lea.vmem %s1, %s233
        $region36: #{tpu_custom_call.1} parent=27 // pred_fallthru
          _
      $region28: #{tpu_custom_call.1} parent=5 // pred_fallthru
        _
      %p235 = scmp.le.s32.totalorder 1, %s18
      %p236 = scmp.lt.s32.totalorder %s18, 3
      %p237 = pnand %p235, %p236
      %p238 = pneg %p237
      // Predicated region
      $region37: #{tpu_custom_call.1} parent=5 // pred_check
        _
      $region38: #{tpu_custom_call.1} parent=5 // pred_check_branch
        %240 = sbr.rel (%p237) target = $region40
      $region39: #{tpu_custom_call.1} parent=5 // pred_region
        %s241 = ssub.s32 %s18, 1
        %s242 = sand.u32 %s31, 1
        %s243 = scalar_lea.sflag [#allocation3], %s242
        %s244 = sand.u32 %s31, 1
        %s245 = smul.addr %s244, 32
        %s246 = scalar_lea.vmem [#allocation2], %s245
        // Predicated region
        $region41: #{tpu_custom_call.1} parent=39 // pred_check
          %p247 = pneg %p44
        $region42: #{tpu_custom_call.1} parent=39 // pred_check_branch
          %249 = sbr.rel (%p247) target = $region44
        $region43: #{tpu_custom_call.1} parent=39 // pred_region
          %250 = dma.done %s243, 512
        $region44: #{tpu_custom_call.1} parent=39 // pred_fallthru
          _
        // Predicated region
        $region45: #{tpu_custom_call.1} parent=39 // pred_check
          %p251 = pneg %p91
        $region46: #{tpu_custom_call.1} parent=39 // pred_check_branch
          %253 = sbr.rel (%p251) target = $region48
        $region47: #{tpu_custom_call.1} parent=39 // pred_region
          %254 = dma.done [#allocation6], 512
        $region48: #{tpu_custom_call.1} parent=39 // pred_fallthru
          _
        // Predicated region
        $region49: #{tpu_custom_call.1} parent=39 // pred_check
          %p255 = pneg %p133
        $region50: #{tpu_custom_call.1} parent=39 // pred_check_branch
          %257 = sbr.rel (%p255) target = $region52
        $region51: #{tpu_custom_call.1} parent=39 // pred_region
          %258 = dma.done [#allocation6], 2048
        $region52: #{tpu_custom_call.1} parent=39 // pred_fallthru
          _
        %s259 = sand.u32 %s31, 1
        %s260 = scalar_lea.sflag [#allocation3], %s259
        %s261 = sand.u32 %s31, 1
        %s262 = smul.addr %s261, 32
        %s263 = scalar_lea.vmem [#allocation2], %s262
        %p264 = pneg %p44
        %p265 = pneg %p41
        %p266 = scmp.lt.s32.totalorder %s23, 1
        %s267 = scalar_select %p266, %s23, 1
        %s268 = smul.addr %s267, 8
        %s269 = scalar_lea.vmem %s1, %s268
        %p270 = pneg %p70
        %p271 = pneg %p67
        %p272 = pneg %p91
        %p273 = pneg %p88
        %p274 = pneg %p112
        %p275 = pneg %p109
        %p276 = pneg %p133
        %p277 = pneg %p130
        %p278 = pneg %p159
        %p279 = pneg %p156
        %s280 = sand.u32 %s146, 1
        %s281 = scalar_lea.sflag [#allocation4], %s280
        %s282 = sand.u32 %s146, 1
        %s283 = smul.addr %s282, 8
        %s284 = scalar_lea.vmem [#allocation8], %s283
        %s285 = smul.u32 8, %s23
        %p286 = scmp.lt.s32.totalorder %s23, 1
        %s287 = scalar_select %p286, %s23, 1
        %s288 = smul.addr %s287, 8
        %s289 = scalar_lea.vmem %s1, %s288
        %v290 = vld [vmem:[%s289] sm:$0xff]
        %v291 = vcvt.s32.f32 %v290
        %v292 = vrcp.pop %v291
        %v293 = vmul.f32 %v291, %v292
        %v294 = vsub.f32 2.0, %v293
        %v295 = vmul.f32 %v292, %v294
        %v296 = vld [vmem:[%s246] sm:$0xf]
        %v297 = vld [vmem:[%s246 + $0x4] sm:$0xf]
        %v298 = vld [vmem:[%s246 + $0x8] sm:$0xf]
        %v299 = vld [vmem:[%s246 + $0xc] sm:$0xf]
        %v300 = vld [vmem:[%s246 + $0x10] sm:$0xf]
        %v301 = vld [vmem:[%s246 + $0x14] sm:$0xf]
        %v302 = vld [vmem:[%s246 + $0x18] sm:$0xf]
        %v303 = vld [vmem:[%s246 + $0x1c] sm:$0xf]
        %v304 = vunpack.c.l.bf16 %v296
        %v305 = vunpack.c.l.bf16 %v297
        %v306 = vunpack.c.l.bf16 %v298
        %v307 = vunpack.c.l.bf16 %v299
        %v308 = vunpack.c.l.bf16 %v300
        %v309 = vunpack.c.l.bf16 %v301
        %v310 = vunpack.c.l.bf16 %v302
        %v311 = vunpack.c.l.bf16 %v303
        %vm312 = vcmp.gt.s32.totalorder %v290, 0
        %v313 = vsel %vm312, %v295, 0.0
        %315 = vset.pattern.permute.xlu0 0
        %316 = vperm.xlu0 %315, %v313
        %v317 = vpop.permute.xlu0 %316
        %v318 = vrot.slane %v317, 1
        %v319 = vrot.slane %v317, 2
        %v320 = vrot.slane %v317, 3
        %v321 = vrot.slane %v317, 4
        %v322 = vrot.slane %v317, 5
        %v323 = vrot.slane %v317, 6
        %v324 = vrot.slane %v317, 7
        %v333 = vmul.f32 %v304, %v317
        %v334 = vmul.f32 %v305, %v318
        %v335 = vmul.f32 %v306, %v319
        %v336 = vmul.f32 %v307, %v320
        %v337 = vmul.f32 %v308, %v321
        %v338 = vmul.f32 %v309, %v322
        %v339 = vmul.f32 %v310, %v323
        %v340 = vmul.f32 %v311, %v324
        %v341 = vadd.f32 %v333, 0.0
        %v342 = vadd.f32 %v334, 0.0
        %v343 = vadd.f32 %v335, 0.0
        %v344 = vadd.f32 %v336, 0.0
        %v345 = vadd.f32 %v337, 0.0
        %v346 = vadd.f32 %v338, 0.0
        %v347 = vadd.f32 %v339, 0.0
        %v348 = vadd.f32 %v340, 0.0
        %vm349 = vcmp.gt.s32.totalorder %v290, 1
        %v350 = vsel %vm349, %v295, 0.0
        %352 = vset.pattern.permute.xlu0 0
        %353 = vperm.xlu0 %352, %v350
        %v354 = vpop.permute.xlu0 %353
        %v355 = vrot.slane %v354, 7
        %v356 = vrot.slane %v354, 1
        %v357 = vrot.slane %v354, 2
        %v358 = vrot.slane %v354, 3
        %v359 = vrot.slane %v354, 4
        %v360 = vrot.slane %v354, 5
        %v361 = vrot.slane %v354, 6
        %v370 = vmul.f32 %v304, %v355
        %v371 = vmul.f32 %v305, %v354
        %v372 = vmul.f32 %v306, %v356
        %v373 = vmul.f32 %v307, %v357
        %v374 = vmul.f32 %v308, %v358
        %v375 = vmul.f32 %v309, %v359
        %v376 = vmul.f32 %v310, %v360
        %v377 = vmul.f32 %v311, %v361
        %v386 = vrot.slane %v370, 1
        %v387 = vrot.slane %v371, 1
        %v388 = vrot.slane %v372, 1
        %v389 = vrot.slane %v373, 1
        %v390 = vrot.slane %v374, 1
        %v391 = vrot.slane %v375, 1
        %v392 = vrot.slane %v376, 1
        %v393 = vrot.slane %v377, 1
        %v402 = vadd.f32 %v341, %v386
        %v403 = vadd.f32 %v342, %v387
        %v404 = vadd.f32 %v343, %v388
        %v405 = vadd.f32 %v344, %v389
        %v406 = vadd.f32 %v345, %v390
        %v407 = vadd.f32 %v346, %v391
        %v408 = vadd.f32 %v347, %v392
        %v409 = vadd.f32 %v348, %v393
        %vm410 = vcmp.gt.s32.totalorder %v290, 2
        %v411 = vsel %vm410, %v295, 0.0
        %413 = vset.pattern.permute.xlu0 0
        %414 = vperm.xlu0 %413, %v411
        %v415 = vpop.permute.xlu0 %414
        %v416 = vrot.slane %v415, 6
        %v417 = vrot.slane %v415, 7
        %v418 = vrot.slane %v415, 1
        %v419 = vrot.slane %v415, 2
        %v420 = vrot.slane %v415, 3
        %v421 = vrot.slane %v415, 4
        %v422 = vrot.slane %v415, 5
        %v431 = vmul.f32 %v304, %v416
        %v432 = vmul.f32 %v305, %v417
        %v433 = vmul.f32 %v306, %v415
        %v434 = vmul.f32 %v307, %v418
        %v435 = vmul.f32 %v308, %v419
        %v436 = vmul.f32 %v309, %v420
        %v437 = vmul.f32 %v310, %v421
        %v438 = vmul.f32 %v311, %v422
        %v447 = vrot.slane %v431, 2
        %v448 = vrot.slane %v432, 2
        %v449 = vrot.slane %v433, 2
        %v450 = vrot.slane %v434, 2
        %v451 = vrot.slane %v435, 2
        %v452 = vrot.slane %v436, 2
        %v453 = vrot.slane %v437, 2
        %v454 = vrot.slane %v438, 2
        %v463 = vadd.f32 %v402, %v447
        %v464 = vadd.f32 %v403, %v448
        %v465 = vadd.f32 %v404, %v449
        %v466 = vadd.f32 %v405, %v450
        %v467 = vadd.f32 %v406, %v451
        %v468 = vadd.f32 %v407, %v452
        %v469 = vadd.f32 %v408, %v453
        %v470 = vadd.f32 %v409, %v454
        %vm471 = vcmp.gt.s32.totalorder %v290, 3
        %v472 = vsel %vm471, %v295, 0.0
        %474 = vset.pattern.permute.xlu0 0
        %475 = vperm.xlu0 %474, %v472
        %v476 = vpop.permute.xlu0 %475
        %v477 = vrot.slane %v476, 5
        %v478 = vrot.slane %v476, 6
        %v479 = vrot.slane %v476, 7
        %v480 = vrot.slane %v476, 1
        %v481 = vrot.slane %v476, 2
        %v482 = vrot.slane %v476, 3
        %v483 = vrot.slane %v476, 4
        %v492 = vmul.f32 %v304, %v477
        %v493 = vmul.f32 %v305, %v478
        %v494 = vmul.f32 %v306, %v479
        %v495 = vmul.f32 %v307, %v476
        %v496 = vmul.f32 %v308, %v480
        %v497 = vmul.f32 %v309, %v481
        %v498 = vmul.f32 %v310, %v482
        %v499 = vmul.f32 %v311, %v483
        %v508 = vrot.slane %v492, 3
        %v509 = vrot.slane %v493, 3
        %v510 = vrot.slane %v494, 3
        %v511 = vrot.slane %v495, 3
        %v512 = vrot.slane %v496, 3
        %v513 = vrot.slane %v497, 3
        %v514 = vrot.slane %v498, 3
        %v515 = vrot.slane %v499, 3
        %v524 = vadd.f32 %v463, %v508
        %v525 = vadd.f32 %v464, %v509
        %v526 = vadd.f32 %v465, %v510
        %v527 = vadd.f32 %v466, %v511
        %v528 = vadd.f32 %v467, %v512
        %v529 = vadd.f32 %v468, %v513
        %v530 = vadd.f32 %v469, %v514
        %v531 = vadd.f32 %v470, %v515
        %vm532 = vcmp.gt.s32.totalorder %v290, 4
        %v533 = vsel %vm532, %v295, 0.0
        %535 = vset.pattern.permute.xlu0 0
        %536 = vperm.xlu0 %535, %v533
        %v537 = vpop.permute.xlu0 %536
        %v538 = vrot.slane %v537, 4
        %v539 = vrot.slane %v537, 5
        %v540 = vrot.slane %v537, 6
        %v541 = vrot.slane %v537, 7
        %v542 = vrot.slane %v537, 1
        %v543 = vrot.slane %v537, 2
        %v544 = vrot.slane %v537, 3
        %v553 = vmul.f32 %v304, %v538
        %v554 = vmul.f32 %v305, %v539
        %v555 = vmul.f32 %v306, %v540
        %v556 = vmul.f32 %v307, %v541
        %v557 = vmul.f32 %v308, %v537
        %v558 = vmul.f32 %v309, %v542
        %v559 = vmul.f32 %v310, %v543
        %v560 = vmul.f32 %v311, %v544
        %v569 = vrot.slane %v553, 4
        %v570 = vrot.slane %v554, 4
        %v571 = vrot.slane %v555, 4
        %v572 = vrot.slane %v556, 4
        %v573 = vrot.slane %v557, 4
        %v574 = vrot.slane %v558, 4
        %v575 = vrot.slane %v559, 4
        %v576 = vrot.slane %v560, 4
        %v585 = vadd.f32 %v524, %v569
        %v586 = vadd.f32 %v525, %v570
        %v587 = vadd.f32 %v526, %v571
        %v588 = vadd.f32 %v527, %v572
        %v589 = vadd.f32 %v528, %v573
        %v590 = vadd.f32 %v529, %v574
        %v591 = vadd.f32 %v530, %v575
        %v592 = vadd.f32 %v531, %v576
        %vm593 = vcmp.gt.s32.totalorder %v290, 5
        %v594 = vsel %vm593, %v295, 0.0
        %596 = vset.pattern.permute.xlu0 0
        %597 = vperm.xlu0 %596, %v594
        %v598 = vpop.permute.xlu0 %597
        %v599 = vrot.slane %v598, 3
        %v600 = vrot.slane %v598, 4
        %v601 = vrot.slane %v598, 5
        %v602 = vrot.slane %v598, 6
        %v603 = vrot.slane %v598, 7
        %v604 = vrot.slane %v598, 1
        %v605 = vrot.slane %v598, 2
        %v614 = vmul.f32 %v304, %v599
        %v615 = vmul.f32 %v305, %v600
        %v616 = vmul.f32 %v306, %v601
        %v617 = vmul.f32 %v307, %v602
        %v618 = vmul.f32 %v308, %v603
        %v619 = vmul.f32 %v309, %v598
        %v620 = vmul.f32 %v310, %v604
        %v621 = vmul.f32 %v311, %v605
        %v630 = vrot.slane %v614, 5
        %v631 = vrot.slane %v615, 5
        %v632 = vrot.slane %v616, 5
        %v633 = vrot.slane %v617, 5
        %v634 = vrot.slane %v618, 5
        %v635 = vrot.slane %v619, 5
        %v636 = vrot.slane %v620, 5
        %v637 = vrot.slane %v621, 5
        %v646 = vadd.f32 %v585, %v630
        %v647 = vadd.f32 %v586, %v631
        %v648 = vadd.f32 %v587, %v632
        %v649 = vadd.f32 %v588, %v633
        %v650 = vadd.f32 %v589, %v634
        %v651 = vadd.f32 %v590, %v635
        %v652 = vadd.f32 %v591, %v636
        %v653 = vadd.f32 %v592, %v637
        %vm654 = vcmp.gt.s32.totalorder %v290, 6
        %v655 = vsel %vm654, %v295, 0.0
        %657 = vset.pattern.permute.xlu0 0
        %658 = vperm.xlu0 %657, %v655
        %v659 = vpop.permute.xlu0 %658
        %v660 = vrot.slane %v659, 2
        %v661 = vrot.slane %v659, 3
        %v662 = vrot.slane %v659, 4
        %v663 = vrot.slane %v659, 5
        %v664 = vrot.slane %v659, 6
        %v665 = vrot.slane %v659, 7
        %v666 = vrot.slane %v659, 1
        %v675 = vmul.f32 %v304, %v660
        %v676 = vmul.f32 %v305, %v661
        %v677 = vmul.f32 %v306, %v662
        %v678 = vmul.f32 %v307, %v663
        %v679 = vmul.f32 %v308, %v664
        %v680 = vmul.f32 %v309, %v665
        %v681 = vmul.f32 %v310, %v659
        %v682 = vmul.f32 %v311, %v666
        %v691 = vrot.slane %v675, 6
        %v692 = vrot.slane %v676, 6
        %v693 = vrot.slane %v677, 6
        %v694 = vrot.slane %v678, 6
        %v695 = vrot.slane %v679, 6
        %v696 = vrot.slane %v680, 6
        %v697 = vrot.slane %v681, 6
        %v698 = vrot.slane %v682, 6
        %v707 = vadd.f32 %v646, %v691
        %v708 = vadd.f32 %v647, %v692
        %v709 = vadd.f32 %v648, %v693
        %v710 = vadd.f32 %v649, %v694
        %v711 = vadd.f32 %v650, %v695
        %v712 = vadd.f32 %v651, %v696
        %v713 = vadd.f32 %v652, %v697
        %v714 = vadd.f32 %v653, %v698
        %vm715 = vcmp.gt.s32.totalorder %v290, 7
        %v716 = vsel %vm715, %v295, 0.0
        %718 = vset.pattern.permute.xlu0 0
        %719 = vperm.xlu0 %718, %v716
        %v720 = vpop.permute.xlu0 %719
        %v721 = vrot.slane %v720, 1
        %v722 = vrot.slane %v720, 2
        %v723 = vrot.slane %v720, 3
        %v724 = vrot.slane %v720, 4
        %v725 = vrot.slane %v720, 5
        %v726 = vrot.slane %v720, 6
        %v727 = vrot.slane %v720, 7
        %v736 = vmul.f32 %v304, %v721
        %v737 = vmul.f32 %v305, %v722
        %v738 = vmul.f32 %v306, %v723
        %v739 = vmul.f32 %v307, %v724
        %v740 = vmul.f32 %v308, %v725
        %v741 = vmul.f32 %v309, %v726
        %v742 = vmul.f32 %v310, %v727
        %v743 = vmul.f32 %v311, %v720
        %v752 = vrot.slane %v736, 7
        %v753 = vrot.slane %v737, 7
        %v754 = vrot.slane %v738, 7
        %v755 = vrot.slane %v739, 7
        %v756 = vrot.slane %v740, 7
        %v757 = vrot.slane %v741, 7
        %v758 = vrot.slane %v742, 7
        %v759 = vrot.slane %v743, 7
        %v768 = vadd.f32 %v707, %v752
        %v769 = vadd.f32 %v708, %v753
        %v770 = vadd.f32 %v709, %v754
        %v771 = vadd.f32 %v710, %v755
        %v772 = vadd.f32 %v711, %v756
        %v773 = vadd.f32 %v712, %v757
        %v774 = vadd.f32 %v713, %v758
        %v775 = vadd.f32 %v714, %v759
        %v776 = vld [vmem:[#allocation5] sm:$0xff]
        %v777 = vld [vmem:[#allocation5 + $0x8] sm:$0xff]
        %v778 = vld [vmem:[#allocation5 + $0x10] sm:$0xff]
        %v779 = vld [vmem:[#allocation5 + $0x18] sm:$0xff]
        %v780 = vld [vmem:[%s3] sm:$0x1]
        %v782 = vlaneseq
        %v783 = vshrl.u32 %v782, 7
        %v784 = vsub.s32 0, %v783
        %v785 = vrot.slane %v780, %v784
        %v795 = vrot.slane %v769, 7
        %vm796 = vcmask 1041409
        %v797 = vsel %vm796, %v795, %v768
        %v798 = vrot.slane %v770, 6
        %vm799 = vcmask 1042434
        %v800 = vsel %vm799, %v798, %v797
        %v801 = vrot.slane %v771, 5
        %vm802 = vcmask 1043459
        %v803 = vsel %vm802, %v801, %v800
        %v804 = vrot.slane %v772, 4
        %vm805 = vcmask 1044484
        %v806 = vsel %vm805, %v804, %v803
        %v807 = vrot.slane %v773, 3
        %vm808 = vcmask 1045509
        %v809 = vsel %vm808, %v807, %v806
        %v810 = vrot.slane %v774, 2
        %vm811 = vcmask 1046534
        %v812 = vsel %vm811, %v810, %v809
        %v813 = vrot.slane %v775, 1
        %vm814 = vcmask 1047559
        %v815 = vsel %vm814, %v813, %v812
        %vm816 = vcmask 261120
        %v817 = vsel %vm816, %v815, 0
        %819 = vmatprep.subr.mxu0 0.0
        %820 = vmatpush1.msra.mxu0 0.0
        %821 = vmatprep.subr.mxu0 0.0
        %822 = vmatpush1.msra.mxu0 0.0
        %823 = vmatprep.subr.mxu0 0.0
        %824 = vmatpush1.msra.mxu0 0.0
        %825 = vmatprep.subr.mxu0 0.0
        %826 = vmatpush1.msra.mxu0 0.0
        %827 = vmatprep.subr.mxu0 0.0
        %828 = vmatpush1.msra.mxu0 0.0
        %829 = vmatprep.subr.mxu0 0.0
        %830 = vmatpush1.msra.mxu0 0.0
        %831 = vmatprep.subr.mxu0 0.0
        %832 = vmatpush1.msra.mxu0 0.0
        %833 = vmatprep.subr.mxu0 0.0
        %834 = vmatpush1.msra.mxu0 0.0
        %835 = vmatprep.subr.mxu0 0.0
        %836 = vmatpush1.msra.mxu0 0.0
        %837 = vmatprep.subr.mxu0 0.0
        %838 = vmatpush1.msra.mxu0 0.0
        %839 = vmatprep.subr.mxu0 0.0
        %840 = vmatpush1.msra.mxu0 0.0
        %841 = vmatprep.subr.mxu0 0.0
        %842 = vmatpush1.msra.mxu0 0.0
        %843 = vmatprep.subr.mxu0 0.0
        %844 = vmatpush1.msra.mxu0 %v779
        %845 = vmatprep.subr.mxu0 0.0
        %846 = vmatpush1.msra.mxu0 %v778
        %847 = vmatprep.subr.mxu0 0.0
        %848 = vmatpush1.msra.mxu0 %v777
        %849 = vmatprep.subr.mxu0 0.0
        %850 = vmatpush1.msra.mxu0 %v776
        %851 = vmatprep.subr.mxu0 0.0
        %852 = vmatpush2.msra.mxu0 0.0
        %853 = vmatprep.subr.mxu0 0.0
        %854 = vmatpush2.msra.mxu0 0.0
        %855 = vmatprep.subr.mxu0 0.0
        %856 = vmatpush2.msra.mxu0 0.0
        %857 = vmatprep.subr.mxu0 0.0
        %858 = vmatpush2.msra.mxu0 0.0
        %859 = vmatprep.subr.mxu0 0.0
        %860 = vmatpush2.msra.mxu0 0.0
        %861 = vmatprep.subr.mxu0 0.0
        %862 = vmatpush2.msra.mxu0 0.0
        %863 = vmatprep.subr.mxu0 0.0
        %864 = vmatpush2.msra.mxu0 0.0
        %865 = vmatprep.subr.mxu0 0.0
        %866 = vmatpush2.msra.mxu0 0.0
        %867 = vmatprep.subr.mxu0 0.0
        %868 = vmatpush2.msra.mxu0 0.0
        %869 = vmatprep.subr.mxu0 0.0
        %870 = vmatpush2.msra.mxu0 0.0
        %871 = vmatprep.subr.mxu0 0.0
        %872 = vmatpush2.msra.mxu0 0.0
        %873 = vmatprep.subr.mxu0 0.0
        %874 = vmatpush2.msra.mxu0 0.0
        %875 = vmatprep.subr.mxu0 0.0
        %876 = vmatpush2.msra.mxu0 0.0
        %877 = vmatprep.subr.mxu0 0.0
        %878 = vmatpush2.msra.mxu0 0.0
        %879 = vmatprep.subr.mxu0 0.0
        %880 = vmatpush2.msra.mxu0 0.0
        %881 = vmatprep.subr.mxu0 0.0
        %882 = vmatpush2.msra.mxu0 0.0
        %883 = vmatprep.mubr.f32.mxu0 0.0
        %884 = vmatmul.mubr.f32.gmra.mxu0 %v817
        %v885 = vpop.f32.mrf.mxu0
        %v886 = vadd.f32 %v785, %v885
        %v887 = vpop.f32.mrf.mxu0
        %888 = vdwg.mxu0
        %889 = vmax.xlane.f32.xlu0 %v886
        %v890 = vpop.xlane.xlu0 %889
        %v891 = vsub.f32 %v886, %v890
        %v892 = vmul.f32 %v891, 1.442695
        %v893 = vpow.pop %v892
        %894 = vadd.xlane.f32.xlu0 %v893
        %v895 = vpop.xlane.xlu0 %894
        %v896 = vrcp.pop %v895
        %v897 = vmul.f32 %v895, %v896
        %v898 = vsub.f32 2.0, %v897
        %v899 = vmul.f32 %v896, %v898
        %v900 = vmul.f32 %v893, %v899
        %v901 = vld [vmem:[#allocation7] sm:$0xff]
        %v902 = vld [vmem:[#allocation7 + $0x8] sm:$0xff]
        %v903 = vld [vmem:[#allocation7 + $0x10] sm:$0xff]
        %v904 = vld [vmem:[#allocation7 + $0x18] sm:$0xff]
        %v905 = vld [vmem:[#allocation7 + $0x20] sm:$0xff]
        %v906 = vld [vmem:[#allocation7 + $0x28] sm:$0xff]
        %v907 = vld [vmem:[#allocation7 + $0x30] sm:$0xff]
        %v908 = vld [vmem:[#allocation7 + $0x38] sm:$0xff]
        %v909 = vld [vmem:[#allocation7 + $0x40] sm:$0xff]
        %v910 = vld [vmem:[#allocation7 + $0x48] sm:$0xff]
        %v911 = vld [vmem:[#allocation7 + $0x50] sm:$0xff]
        %v912 = vld [vmem:[#allocation7 + $0x58] sm:$0xff]
        %v913 = vld [vmem:[#allocation7 + $0x60] sm:$0xff]
        %v914 = vld [vmem:[#allocation7 + $0x68] sm:$0xff]
        %v915 = vld [vmem:[#allocation7 + $0x70] sm:$0xff]
        %v916 = vld [vmem:[#allocation7 + $0x78] sm:$0xff]
        %917 = vmatprep.subr.mxu0 0.0
        %918 = vmatpush1.msra.mxu0 %v916
        %919 = vmatprep.subr.mxu0 0.0
        %920 = vmatpush1.msra.mxu0 %v915
        %921 = vmatprep.subr.mxu0 0.0
        %922 = vmatpush1.msra.mxu0 %v914
        %923 = vmatprep.subr.mxu0 0.0
        %924 = vmatpush1.msra.mxu0 %v913
        %925 = vmatprep.subr.mxu0 0.0
        %926 = vmatpush1.msra.mxu0 %v912
        %927 = vmatprep.subr.mxu0 0.0
        %928 = vmatpush1.msra.mxu0 %v911
        %929 = vmatprep.subr.mxu0 0.0
        %930 = vmatpush1.msra.mxu0 %v910
        %931 = vmatprep.subr.mxu0 0.0
        %932 = vmatpush1.msra.mxu0 %v909
        %933 = vmatprep.subr.mxu0 0.0
        %934 = vmatpush1.msra.mxu0 %v908
        %935 = vmatprep.subr.mxu0 0.0
        %936 = vmatpush1.msra.mxu0 %v907
        %937 = vmatprep.subr.mxu0 0.0
        %938 = vmatpush1.msra.mxu0 %v906
        %939 = vmatprep.subr.mxu0 0.0
        %940 = vmatpush1.msra.mxu0 %v905
        %941 = vmatprep.subr.mxu0 0.0
        %942 = vmatpush1.msra.mxu0 %v904
        %943 = vmatprep.subr.mxu0 0.0
        %944 = vmatpush1.msra.mxu0 %v903
        %945 = vmatprep.subr.mxu0 0.0
        %946 = vmatpush1.msra.mxu0 %v902
        %947 = vmatprep.subr.mxu0 0.0
        %948 = vmatpush1.msra.mxu0 %v901
        %949 = vmatprep.subr.mxu0 0.0
        %950 = vmatpush2.msra.mxu0 0.0
        %951 = vmatprep.subr.mxu0 0.0
        %952 = vmatpush2.msra.mxu0 0.0
        %953 = vmatprep.subr.mxu0 0.0
        %954 = vmatpush2.msra.mxu0 0.0
        %955 = vmatprep.subr.mxu0 0.0
        %956 = vmatpush2.msra.mxu0 0.0
        %957 = vmatprep.subr.mxu0 0.0
        %958 = vmatpush2.msra.mxu0 0.0
        %959 = vmatprep.subr.mxu0 0.0
        %960 = vmatpush2.msra.mxu0 0.0
        %961 = vmatprep.subr.mxu0 0.0
        %962 = vmatpush2.msra.mxu0 0.0
        %963 = vmatprep.subr.mxu0 0.0
        %964 = vmatpush2.msra.mxu0 0.0
        %965 = vmatprep.subr.mxu0 0.0
        %966 = vmatpush2.msra.mxu0 0.0
        %967 = vmatprep.subr.mxu0 0.0
        %968 = vmatpush2.msra.mxu0 0.0
        %969 = vmatprep.subr.mxu0 0.0
        %970 = vmatpush2.msra.mxu0 0.0
        %971 = vmatprep.subr.mxu0 0.0
        %972 = vmatpush2.msra.mxu0 0.0
        %973 = vmatprep.subr.mxu0 0.0
        %974 = vmatpush2.msra.mxu0 0.0
        %975 = vmatprep.subr.mxu0 0.0
        %976 = vmatpush2.msra.mxu0 0.0
        %977 = vmatprep.subr.mxu0 0.0
        %978 = vmatpush2.msra.mxu0 0.0
        %979 = vmatprep.subr.mxu0 0.0
        %980 = vmatpush2.msra.mxu0 0.0
        %981 = vmatprep.mubr.f32.mxu0 0.0
        %982 = vmatmul.mubr.f32.gmra.mxu0 %v900
        %v983 = vpop.f32.mrf.mxu0
        %v984 = vadd.f32 1e-06, %v983
        %v985 = vpop.f32.mrf.mxu0
        %986 = vdwg.mxu0
        %v987 = vlog2.pop %v984
        %v988 = vmul.f32 %v987, 0.6931472
        %989 = vst [vmem:[%s284] sm:$0xff] %v988
        %s990 = sand.u32 %s146, 1
        %s991 = scalar_lea.sflag [#allocation4], %s990
        %s992 = sand.u32 %s146, 1
        %s993 = smul.addr %s992, 8
        %s994 = scalar_lea.vmem [#allocation8], %s993
        // Predicated region
        $region53: #{tpu_custom_call.1} parent=39 // pred_check
          %p995 = pneg %p156
        $region54: #{tpu_custom_call.1} parent=39 // pred_check_branch
          %997 = sbr.rel (%p995) target = $region56
        $region55: #{tpu_custom_call.1} parent=39 // pred_region
          %s999 = ssub.s32 128, 128
          %1000 = vsyncadd %s991, %s999
          %s1001 = smul.addr %s23, 128
          %s1002 = scalar_lea.hbm %s5, %s1001
          %s1004 = sshll.u32 %s994, 4
          %s1005 = int_to_ptr.vmem [resolvable:$true] %s1004
          %1007 = dma.vmem_to_hbm [thread:$0]  %s1005, 128, %s1002, %s991
        $region56: #{tpu_custom_call.1} parent=39 // pred_fallthru
          _
      $region40: #{tpu_custom_call.1} parent=5 // pred_fallthru
        _
      %p1008 = scmp.le.s32.totalorder 2, %s18
      // Predicated region
      $region57: #{tpu_custom_call.1} parent=5 // pred_check
        %p1009 = pneg %p1008
      $region58: #{tpu_custom_call.1} parent=5 // pred_check_branch
        %1011 = sbr.rel (%p1009) target = $region60
      $region59: #{tpu_custom_call.1} parent=5 // pred_region
        %s1012 = ssub.s32 %s18, 2
        // Predicated region
        $region61: #{tpu_custom_call.1} parent=59 // pred_check
          %p1013 = pneg %p162
        $region62: #{tpu_custom_call.1} parent=59 // pred_check_branch
          %1015 = sbr.rel (%p1013) target = $region64
        $region63: #{tpu_custom_call.1} parent=59 // pred_region
          %s1016 = sand.u32 %s147, 1
          %s1017 = scalar_lea.sflag [#allocation4], %s1016
          %s1018 = sand.u32 %s147, 1
          %s1019 = smul.addr %s1018, 8
          %s1020 = scalar_lea.vmem [#allocation8], %s1019
          %1021 = dma.done %s1017, 128
        $region64: #{tpu_custom_call.1} parent=59 // pred_fallthru
          _
      $region60: #{tpu_custom_call.1} parent=5 // pred_fallthru
        _
    $region6: #{tpu_custom_call.1} parent=1 // loop_footer
      %s22 = sadd.s32 1, %s18
    $region7: #{tpu_custom_call.1} parent=1 // loop_footer_branch
      %17 = sbr.rel target = $region3
    $region8: #{tpu_custom_call.1} parent=1 // loop_exit
      _
    %1022 = vsyncpa [#allocation3], 1
    %s1023 = scalar_lea.sflag [#allocation3], 1
    %1024 = vsyncpa %s1023, 1
    %1025 = vsyncpa [#allocation6], 1
    %1026 = vsyncpa [#allocation4], 1
    %s1027 = scalar_lea.sflag [#allocation4], 1
    %1028 = vsyncpa %s1027, 1

</llo_original>
